<compile_context>
chip_gen: v7x
topology: tpu7x:2x2x1
jax: 0.10.0
libtpu: 0.0.40
codegen_flags: <defaults>
</compile_context>

<pallas_src>
import jax
import jax.numpy as jnp
from jax.experimental import pallas as pl
from jax.experimental.pallas import tpu as pltpu

# ----- deterministic config (mirrors the module's __init__ shapes) ------------
FEATURE_SIZE = 16          # config['spans']['feature_size']
OUTPUT_SIZE = 32           # config['spans']['output_size']  (FFNN hidden size)
TOKEN_EMB_SIZE = 32        # config['token_emb_size']
SPAN_SIZE = TOKEN_EMB_SIZE * 3 + FEATURE_SIZE            # 112
SPEAKER_BUCKETS = 2        # config['pairwise']['speaker_buckets']
ANT_DIST_BUCKETS = 10      # config['pairwise']['antecedent_distance_buckets']
SEGMENT_BUCKETS = 3        # config['pairwise']['segment_buckets']
PAIR_DIM = SPAN_SIZE * 3 + FEATURE_SIZE * 4              # 400  (slow_scorer input)
DIST_TABLE_ROWS = 16       # 10 distance buckets padded to 16 (one-hot width)

LANE = 128                 # TPU lane width
HI = jax.lax.Precision.HIGHEST


def _round_up(x, m):
    return (x + m - 1) // m * m


def _cdiv(a, b):
    return -(-a // b)


# ----------------------------- Pallas kernel ----------------------------------
def _scorer_kernel(ant_ref, bkt_ref, w_ref, tab_ref, wout_ref, out_ref):
    """One c-block, all M spans at once.

      h      = relu(ant @ W_stacked + onehot(bucket) @ dist_bias_table)   (bc, M*H)
      scores = W_out_blockdiag^T contracted with h                        (M, bc)
    """
    ant = ant_ref[...]                                            # (bc, S)
    # Distance feature rebuilt in-kernel from the 4 B/row bucket id (instead of
    # streaming a (c, H) f32 table); the tiny K=16 dot rides in MXU K-pad slack.
    onehot = (jax.lax.broadcasted_iota(
        jnp.int32, (ant.shape[0], tab_ref.shape[0]), 1) == bkt_ref[...]
              ).astype(w_ref.dtype)                               # (bc, 16)
    h = jnp.dot(ant, w_ref[...], preferred_element_type=jnp.float32)
    h = h + jnp.dot(onehot, tab_ref[...], preferred_element_type=jnp.float32)
    h = jnp.maximum(h, 0.0)                                       # (bc, M*H)
    # TODO(synk): dropout omitted (inference / eval mode).
    # Output projection against block-diagonal W_out^T on the (under-used) MXU:
    # lane-dense (M, bc) store, no masked (c, 1) writes.
    out_ref[...] = jax.lax.dot_general(
        wout_ref[...], h, (((1,), (1,)), ((), ())),
        preferred_element_type=jnp.float32)


def slow_antecedent_scores_pallas(antecedent_emb, dist_buckets, w_stacked,
                                  dist_bias_table, wout_blockdiag_t, *,
                                  block_c=2048, use_bf16=False):
    """antecedent_emb (c,S), dist_buckets (c,1) i32 -> scores (M, c) f32 (no b_out)."""
    c, s = antecedent_emb.shape
    mh = w_stacked.shape[1]
    m = wout_blockdiag_t.shape[0]
    nb = dist_bias_table.shape[0]

    if use_bf16:
        # TODO(synk): changes rounding vs the f32 PyTorch module; halves ant HBM.
        antecedent_emb = antecedent_emb.astype(jnp.bfloat16)
        w_stacked = w_stacked.astype(jnp.bfloat16)
        dist_bias_table = dist_bias_table.astype(jnp.bfloat16)

    # Tile choice: tiny c -> one full-array block (no 128-row padding / grid
    # machinery); otherwise >= 2 lane-aligned blocks (keeps both v7x TCs busy),
    # capped at block_c.  No jnp.pad: Pallas masks the partial trailing block.
    if c <= 2 * LANE:
        bc = c
    else:
        bc = min(_round_up(block_c, LANE), _round_up(_cdiv(c, 2), LANE))
    num_blocks = _cdiv(c, bc)

    out = pl.pallas_call(
        _scorer_kernel,
        out_shape=jax.ShapeDtypeStruct((m, c), jnp.float32),
        grid=(num_blocks,),
        in_specs=[
            pl.BlockSpec((bc, s), lambda i: (i, 0)),     # antecedent rows  (streamed)
            pl.BlockSpec((bc, 1), lambda i: (i, 0)),     # distance buckets (streamed)
            pl.BlockSpec((s, mh), lambda i: (0, 0)),     # stacked W_eff    (resident)
            pl.BlockSpec((nb, mh), lambda i: (0, 0)),    # dist+bias table  (resident)
            pl.BlockSpec((m, mh), lambda i: (0, 0)),     # block-diag W_out (resident)
        ],
        out_specs=pl.BlockSpec((m, bc), lambda i: (0, i)),   # lane-dense (M, c)
        compiler_params=pltpu.CompilerParams(
            # TODO(synk): try pltpu.CORE_PARALLEL on v7x (2 TC/chip).
            dimension_semantics=("parallel",)),
    )(antecedent_emb, dist_buckets, w_stacked, dist_bias_table, wout_blockdiag_t)
    return out


# --------------------------- JAX glue (module) ---------------------------------
def bucket_distance(distances):
    """[0,1,2,3,4,5-7,8-15,16-31,32-63,64+] semi-logscale buckets."""
    d = distances.astype(jnp.int32)
    logspace_idx = jnp.floor(
        jnp.log(jnp.maximum(jnp.abs(d).astype(jnp.float32), 1.0)) / jnp.log(2.0)
    ).astype(jnp.int32) + 3
    use_identity = (d <= 4).astype(jnp.int32)
    combined = use_identity * d + (1 - use_identity) * logspace_idx
    return jnp.clip(combined, 0, 9)


def init_params(key):
    ks = jax.random.split(key, 6)
    scale = 0.05
    return {
        "same_speaker_emb": scale * jax.random.normal(ks[0], (SPEAKER_BUCKETS, FEATURE_SIZE), jnp.float32),
        "antecedent_distance_emb": scale * jax.random.normal(ks[1], (ANT_DIST_BUCKETS, FEATURE_SIZE), jnp.float32),
        "segment_distance_emb": scale * jax.random.normal(ks[2], (SEGMENT_BUCKETS, FEATURE_SIZE), jnp.float32),
        "hidden_weights_0": scale * jax.random.normal(ks[3], (PAIR_DIM, OUTPUT_SIZE), jnp.float32),
        "hidden_bias_0": scale * jax.random.normal(ks[4], (OUTPUT_SIZE,), jnp.float32),
        "output_weights": scale * jax.random.normal(ks[5], (OUTPUT_SIZE, 1), jnp.float32),
        "output_bias": jnp.array(0.1, jnp.float32),
    }


def scoring_module_forward_batched(params, span_embs, cluster_embs, offsets,
                                   genre_emb, *, use_bf16=False, block_c=2048):
    """span_embs: (M, S); cluster_embs: (c, S); offsets: (c,) i32; genre_emb: (1, F).

    Returns (M, c) scores — the antecedent stream is read once for all M spans.
    """
    S, F, H = SPAN_SIZE, FEATURE_SIZE, OUTPUT_SIZE
    tops = jnp.asarray(span_embs, jnp.float32)                # (M, S)
    ant = jnp.asarray(cluster_embs, jnp.float32)              # (c, S)
    genre = jnp.asarray(genre_emb, jnp.float32).reshape(-1)   # squeeze(0) -> (F,)
    m = tops.shape[0]

    w0 = params["hidden_weights_0"]                           # (400, H)
    b0 = params["hidden_bias_0"]                              # (H,)
    wt, wa, ws = w0[:S], w0[S:2 * S], w0[2 * S:3 * S]
    wf = w0[3 * S:]                                           # feature rows (4F, H)
    wf_gen, wf_dist, wf_seg = wf[F:2 * F], wf[2 * F:3 * F], wf[3 * F:]
    # Speaker block wf[:F] multiplies a hard-zeroed embedding in the torch code -> 0.

    # Per-span effective weight:  ant@Wa + (ant*top_m)@Ws == ant @ (Wa + top_m[:,None]*Ws)
    w_eff = wa[None, :, :] + tops[:, :, None] * ws[None, :, :]           # (M, S, H)
    w_stacked = jnp.transpose(w_eff, (1, 0, 2)).reshape(S, m * H)        # (S, M*H)

    # Per-span constant bias (layer-0 bias + target, genre, segment-0 rows).
    seg0 = params["segment_distance_emb"][0]                             # segment dist == 0
    bias = (b0[None, :] + jnp.dot(tops, wt, precision=HI)
            + jnp.dot(genre, wf_gen, precision=HI)[None, :]
            + jnp.dot(seg0, wf_seg, precision=HI)[None, :])              # (M, H)

    # Distance-hidden table with the bias folded into every row (rows 10..15
    # are zero padding that the in-kernel one-hot never selects).
    dist_h = jnp.dot(params["antecedent_distance_emb"], wf_dist, precision=HI)  # (10, H)
    tab = dist_h[:, None, :] + bias[None, :, :]                          # (10, M, H)
    tab = jnp.concatenate(
        [tab, jnp.zeros((DIST_TABLE_ROWS - ANT_DIST_BUCKETS, m, H), jnp.float32)], axis=0)
    tab_stacked = tab.reshape(DIST_TABLE_ROWS, m * H)                    # (16, M*H)

    buckets = bucket_distance(offsets).astype(jnp.int32)[:, None]        # (c, 1)

    # Block-diagonal output projection (transposed): row m carries w_out in its slice.
    wout = params["output_weights"].reshape(-1).astype(jnp.float32)      # (H,)
    wout_blockdiag_t = jnp.kron(jnp.eye(m, dtype=jnp.float32), wout[None, :])  # (M, M*H)

    scores = slow_antecedent_scores_pallas(
        ant, buckets, w_stacked, tab_stacked, wout_blockdiag_t,
        block_c=block_c, use_bf16=use_bf16)                              # (M, c)
    return scores + params["output_bias"]


def scoring_module_forward(params, span_emb, cluster_embs, offsets, genre_emb):
    """Single-span module semantics: span_emb (S,), returns (1, c, 1) like FFNN(pair_emb)."""
    scores = scoring_module_forward_batched(
        params, span_emb[None, :], cluster_embs, offsets, genre_emb)     # (1, c)
    return scores[:, :, None]


# --------------------------- pure-JAX reference --------------------------------
def reference_forward(params, span_emb, cluster_embs, offsets, genre_emb):
    """Direct port of ScoringModule.forward (batch 1), for validation."""
    c = cluster_embs.shape[0]
    target = jnp.tile(span_emb[None, :], (c, 1))
    similarity = cluster_embs * span_emb[None, :]
    speaker = jnp.zeros((c, FEATURE_SIZE), jnp.float32)        # hard-zeroed in the module
    genre = jnp.tile(genre_emb.reshape(1, -1), (c, 1))
    buckets = bucket_distance(offsets)
    dist = params["antecedent_distance_emb"][buckets]
    seg = jnp.tile(params["segment_distance_emb"][0][None, :], (c, 1))
    pair = jnp.concatenate([target, cluster_embs, similarity,
                            speaker, genre, dist, seg], axis=1)          # (c, 400)
    h = jnp.maximum(jnp.dot(pair, params["hidden_weights_0"], precision=HI)
                    + params["hidden_bias_0"], 0.0)
    scores = jnp.dot(h, params["output_weights"], precision=HI) + params["output_bias"]
    return scores[None]                                                  # (1, c, 1)


# ----------------------------------- main --------------------------------------
if __name__ == "__main__":
    key = jax.random.PRNGKey(0)
    k_par, k_span, k_clu, k_gen, k_span2, k_clu2, k_off2 = jax.random.split(key, 7)

    params = init_params(k_par)

    # --- module-shaped demo: one target span, C=8 antecedent clusters (tiny path) ---
    C = 8
    span_emb = jax.random.normal(k_span, (SPAN_SIZE,), jnp.float32)
    cluster_embs = jax.random.normal(k_clu, (C, SPAN_SIZE), jnp.float32)
    offsets = jnp.array([1, 2, 3, 5, 9, 20, 40, 100], jnp.int32)
    genre_emb = jax.random.normal(k_gen, (1, FEATURE_SIZE), jnp.float32)

    forward = jax.jit(scoring_module_forward)
    scores = jax.block_until_ready(forward(params, span_emb, cluster_embs, offsets, genre_emb))
    assert scores.shape == (1, C, 1), scores.shape
    ref = reference_forward(params, span_emb, cluster_embs, offsets, genre_emb)
    assert bool(jnp.allclose(scores, ref, atol=2e-3, rtol=2e-3)), "single-span mismatch"

    # --- batched path: M=4 target spans, c=300 antecedents (grid + partial block) ---
    M, C2 = 4, 300
    span_embs = jax.random.normal(k_span2, (M, SPAN_SIZE), jnp.float32)
    cluster_embs2 = jax.random.normal(k_clu2, (C2, SPAN_SIZE), jnp.float32)
    offsets2 = jax.random.randint(k_off2, (C2,), 0, 200).astype(jnp.int32)

    forward_b = jax.jit(scoring_module_forward_batched)
    scores_b = jax.block_until_ready(
        forward_b(params, span_embs, cluster_embs2, offsets2, genre_emb))
    assert scores_b.shape == (M, C2), scores_b.shape
    ref_b = jnp.stack([
        reference_forward(params, span_embs[mm], cluster_embs2, offsets2, genre_emb)[0, :, 0]
        for mm in range(M)])
    assert bool(jnp.allclose(scores_b, ref_b, atol=2e-3, rtol=2e-3)), "batched mismatch"

    print("KERNEL_OK")
</pallas_src>

<mosaic_0001>
module attributes {stable_mosaic.version = 11 : i64} {
  func.func @_scorer_kernel(%arg0: i32, %arg1: memref<8x112xf32, #tpu.memory_space<vmem>>, %arg2: memref<8x1xi32, #tpu.memory_space<vmem>>, %arg3: memref<112x32xf32, #tpu.memory_space<vmem>>, %arg4: memref<16x32xf32, #tpu.memory_space<vmem>>, %arg5: memref<1x32xf32, #tpu.memory_space<vmem>>, %arg6: memref<1x8xf32, #tpu.memory_space<vmem>>) attributes {dimension_semantics = [#tpu.dimension_semantics<parallel>], iteration_bounds = array<i64: 1>, scalar_prefetch = 0 : i64, scratch_operands = 0 : i64, tpu.core_type = #tpu.core_type<tc>, window_params = [{transform_indices = @transform_0, window_bounds = array<i64: 8, 112>}, {transform_indices = @transform_1, window_bounds = array<i64: 8, 1>}, {pipeline_mode = #tpu.pipeline_mode<synchronous>, transform_indices = @transform_2, window_bounds = array<i64: 112, 32>}, {pipeline_mode = #tpu.pipeline_mode<synchronous>, transform_indices = @transform_3, window_bounds = array<i64: 16, 32>}, {pipeline_mode = #tpu.pipeline_mode<synchronous>, transform_indices = @transform_4, window_bounds = array<i64: 1, 32>}, {transform_indices = @transform_5, window_bounds = array<i64: 1, 8>}]} {
    %c0 = arith.constant 0 : index
    %c0_0 = arith.constant 0 : index
    %0 = vector.load %arg1[%c0, %c0_0] : memref<8x112xf32, #tpu.memory_space<vmem>>, vector<8x112xf32>
    %1 = tpu.iota {dimensions = array<i32: 1>} : vector<8x16xi32>
    %c0_1 = arith.constant 0 : index
    %c0_2 = arith.constant 0 : index
    %2 = vector.load %arg2[%c0_1, %c0_2] : memref<8x1xi32, #tpu.memory_space<vmem>>, vector<8x1xi32>
    %3 = vector.broadcast %2 : vector<8x1xi32> to vector<8x16xi32>
    %4 = arith.cmpi eq, %1, %3 : vector<8x16xi32>
    %5 = arith.extui %4 : vector<8x16xi1> to vector<8x16xi32>
    %6 = arith.sitofp %5 : vector<8x16xi32> to vector<8x16xf32>
    %c0_3 = arith.constant 0 : index
    %c0_4 = arith.constant 0 : index
    %7 = vector.load %arg3[%c0_3, %c0_4] : memref<112x32xf32, #tpu.memory_space<vmem>>, vector<112x32xf32>
    %cst = arith.constant dense<0.000000e+00> : vector<8x32xf32>
    %8 = tpu.matmul %0, %7, %cst {dimension_numbers = #tpu.dot_dimension_numbers<[1], [0], [0], [1], [0, 0, 1, 1], [], []>} : vector<8x112xf32>, vector<112x32xf32>, vector<8x32xf32> -> vector<8x32xf32>
    %c0_5 = arith.constant 0 : index
    %c0_6 = arith.constant 0 : index
    %9 = vector.load %arg4[%c0_5, %c0_6] : memref<16x32xf32, #tpu.memory_space<vmem>>, vector<16x32xf32>
    %cst_7 = arith.constant dense<0.000000e+00> : vector<8x32xf32>
    %10 = tpu.matmul %6, %9, %cst_7 {dimension_numbers = #tpu.dot_dimension_numbers<[1], [0], [0], [1], [0, 0, 1, 1], [], []>} : vector<8x16xf32>, vector<16x32xf32>, vector<8x32xf32> -> vector<8x32xf32>
    %11 = arith.addf %8, %10 : vector<8x32xf32>
    %cst_8 = arith.constant 0.000000e+00 : f32
    %12 = vector.broadcast %cst_8 : f32 to vector<8x32xf32>
    %13 = arith.maximumf %11, %12 : vector<8x32xf32>
    %c0_9 = arith.constant 0 : index
    %c0_10 = arith.constant 0 : index
    %14 = vector.load %arg5[%c0_9, %c0_10] : memref<1x32xf32, #tpu.memory_space<vmem>>, vector<1x32xf32>
    %cst_11 = arith.constant dense<0.000000e+00> : vector<1x8xf32>
    %15 = tpu.matmul %14, %13, %cst_11 {dimension_numbers = #tpu.dot_dimension_numbers<[1], [1], [0], [0], [0, 0, 1, 0], [], []>} : vector<1x32xf32>, vector<8x32xf32>, vector<1x8xf32> -> vector<1x8xf32>
    %c0_12 = arith.constant 0 : index
    %c0_13 = arith.constant 0 : index
    %16 = vector.load %arg6[%c0_12, %c0_13] : memref<1x8xf32, #tpu.memory_space<vmem>>, vector<1x8xf32>
    tpu.vector_store %arg6[%c0_12, %c0_13], %15 {strides = array<i32>} : memref<1x8xf32, #tpu.memory_space<vmem>>, vector<1x8xf32>,
    return
  }
  func.func @transform_0(%arg0: i32) -> (i32, i32) {
    %c0_i32 = arith.constant 0 : i32
    %c0_i32_0 = arith.constant 0 : i32
    return %arg0, %c0_i32 : i32, i32
  }
  func.func @transform_1(%arg0: i32) -> (i32, i32) {
    %c0_i32 = arith.constant 0 : i32
    %c0_i32_0 = arith.constant 0 : i32
    return %arg0, %c0_i32 : i32, i32
  }
  func.func @transform_2(%arg0: i32) -> (i32, i32) {
    %c0_i32 = arith.constant 0 : i32
    %c0_i32_0 = arith.constant 0 : i32
    %c0_i32_1 = arith.constant 0 : i32
    return %c0_i32, %c0_i32_0 : i32, i32
  }
  func.func @transform_3(%arg0: i32) -> (i32, i32) {
    %c0_i32 = arith.constant 0 : i32
    %c0_i32_0 = arith.constant 0 : i32
    %c0_i32_1 = arith.constant 0 : i32
    return %c0_i32, %c0_i32_0 : i32, i32
  }
  func.func @transform_4(%arg0: i32) -> (i32, i32) {
    %c0_i32 = arith.constant 0 : i32
    %c0_i32_0 = arith.constant 0 : i32
    %c0_i32_1 = arith.constant 0 : i32
    return %c0_i32, %c0_i32_0 : i32, i32
  }
  func.func @transform_5(%arg0: i32) -> (i32, i32) {
    %c0_i32 = arith.constant 0 : i32
    %c0_i32_0 = arith.constant 0 : i32
    return %c0_i32, %arg0 : i32, i32
  }
}

</mosaic_0001>

<llo_original>
// kernel: scoring_module_forward.1
$region0: #{scoring_module_forward.1}
  #allocation0 [shape = 'u32[]', space=smem, size = 0x4, offset = 0x4, fixed_abs, tag = 'smem constant byte address 0x4 - core index']
  #allocation1 [shape = 'u32[144,128]{1,0:T(1,128)}', space=vmem, size = 0x12000, scoped, tag = 'internal scratch']
  %s0 = inlined_call_operand.vmem [shape: f32[8,112], index: 0, kind: input, shape index: {}]
  %s1 = inlined_call_operand.vmem [shape: s32[8,1], index: 1, kind: input, shape index: {}]
  %s2 = inlined_call_operand.vmem [shape: f32[112,32], index: 2, kind: input, shape index: {}]
  %s3 = inlined_call_operand.vmem [shape: f32[16,32], index: 3, kind: input, shape index: {}]
  %s4 = inlined_call_operand.vmem [shape: f32[1,32], index: 4, kind: input, shape index: {}]
  %s5 = inlined_call_operand.vmem [shape: f32[1,8], index: 5, kind: output, shape index: {}]
  %s6 = sld [smem:[#allocation0]]
  $region30: #{scoring_module_forward.1} parent=0
    _
  %s8 = ssub.s32 1, %s6
  %s9 = scalar_select 0, %s8, %s6
  // Predicated region
  $region2: #{scoring_module_forward.1} parent=0 // pred_check
    _
  $region3: #{scoring_module_forward.1} parent=0 // pred_check_branch
    %11 = sbr.rel (0) target = $region5
  $region4: #{scoring_module_forward.1} parent=0 // pred_region
    _
  $region5: #{scoring_module_forward.1} parent=0 // pred_fallthru
    _
  // Predicated region
  $region6: #{scoring_module_forward.1} parent=0 // pred_check
    _
  $region7: #{scoring_module_forward.1} parent=0 // pred_check_branch
    %13 = sbr.rel (0) target = $region9
  $region8: #{scoring_module_forward.1} parent=0 // pred_region
    _
  $region9: #{scoring_module_forward.1} parent=0 // pred_fallthru
    _
  // Predicated region
  $region10: #{scoring_module_forward.1} parent=0 // pred_check
    _
  $region11: #{scoring_module_forward.1} parent=0 // pred_check_branch
    %15 = sbr.rel (0) target = $region13
  $region12: #{scoring_module_forward.1} parent=0 // pred_region
    _
  $region13: #{scoring_module_forward.1} parent=0 // pred_fallthru
    _
  // Predicated region
  $region14: #{scoring_module_forward.1} parent=0 // pred_check
    _
  $region15: #{scoring_module_forward.1} parent=0 // pred_check_branch
    %17 = sbr.rel (0) target = $region17
  $region16: #{scoring_module_forward.1} parent=0 // pred_region
    _
  $region17: #{scoring_module_forward.1} parent=0 // pred_fallthru
    _
  // Predicated region
  $region18: #{scoring_module_forward.1} parent=0 // pred_check
    _
  $region19: #{scoring_module_forward.1} parent=0 // pred_check_branch
    %19 = sbr.rel (0) target = $region21
  $region20: #{scoring_module_forward.1} parent=0 // pred_region
    _
  $region21: #{scoring_module_forward.1} parent=0 // pred_fallthru
    _
  %v20 = vld [vmem:[%s0] sm:$0xff]
  %v21 = vlaneseq
  %v22 = vand.u32 %v21, 127
  %v23 = vld [vmem:[%s1] sm:$0xff]
  %24 = vset.pattern.permute.xlu0 0
  %25 = vperm.xlu0 %24, %v23
  %v26 = vpop.permute.xlu0 %25
  %vm27 = vcmp.eq.s32.totalorder %v22, %v26
  %v28 = vsel %vm27, 1, 0
  %v29 = vcvt.s32.f32 %v28
  %v30 = vld [vmem:[%s2] sm:$0xff]
  %v31 = vld [vmem:[%s2 + $0x8] sm:$0xff]
  %v32 = vld [vmem:[%s2 + $0x10] sm:$0xff]
  %v33 = vld [vmem:[%s2 + $0x18] sm:$0xff]
  %v34 = vld [vmem:[%s2 + $0x20] sm:$0xff]
  %v35 = vld [vmem:[%s2 + $0x28] sm:$0xff]
  %v36 = vld [vmem:[%s2 + $0x30] sm:$0xff]
  %v37 = vld [vmem:[%s2 + $0x38] sm:$0xff]
  %v38 = vld [vmem:[%s2 + $0x40] sm:$0xff]
  %v39 = vld [vmem:[%s2 + $0x48] sm:$0xff]
  %v40 = vld [vmem:[%s2 + $0x50] sm:$0xff]
  %v41 = vld [vmem:[%s2 + $0x58] sm:$0xff]
  %v42 = vld [vmem:[%s2 + $0x60] sm:$0xff]
  %v43 = vld [vmem:[%s2 + $0x68] sm:$0xff]
  %v44 = vld [vmem:[%s3] sm:$0xff]
  %v45 = vld [vmem:[%s3 + $0x8] sm:$0xff]
  %vm46 = vcmask 130048
  %v48 = vsel %vm46, %v29, 0
  %50 = vmatprep.subr.mxu0 0.0
  %51 = vmatpush1.msra.mxu0 %v44
  %52 = vmatprep.subr.mxu0 0.0
  %53 = vmatpush1.msra.mxu0 %v45
  %54 = vmatprep.subr.mxu0 0.0
  %55 = vmatpush1.msra.mxu0 0.0
  %56 = vmatprep.subr.mxu0 0.0
  %57 = vmatpush1.msra.mxu0 0.0
  %58 = vmatprep.subr.mxu0 0.0
  %59 = vmatpush1.msra.mxu0 0.0
  %60 = vmatprep.subr.mxu0 0.0
  %61 = vmatpush1.msra.mxu0 0.0
  %62 = vmatprep.subr.mxu0 0.0
  %63 = vmatpush1.msra.mxu0 0.0
  %64 = vmatprep.subr.mxu0 0.0
  %65 = vmatpush1.msra.mxu0 0.0
  %66 = vmatprep.subr.mxu0 0.0
  %67 = vmatpush1.msra.mxu0 0.0
  %68 = vmatprep.subr.mxu0 0.0
  %69 = vmatpush1.msra.mxu0 0.0
  %70 = vmatprep.subr.mxu0 0.0
  %71 = vmatpush1.msra.mxu0 0.0
  %72 = vmatprep.subr.mxu0 0.0
  %73 = vmatpush1.msra.mxu0 0.0
  %74 = vmatprep.subr.mxu0 0.0
  %75 = vmatpush1.msra.mxu0 0.0
  %76 = vmatprep.subr.mxu0 0.0
  %77 = vmatpush1.msra.mxu0 0.0
  %78 = vmatprep.subr.mxu0 0.0
  %79 = vmatpush1.msra.mxu0 0.0
  %80 = vmatprep.subr.mxu0 0.0
  %81 = vmatpush1.msra.mxu0 0.0
  %82 = vmatprep.subr.mxu0 0.0
  %83 = vmatpush1.msra.mxu0 0.0
  %84 = vmatprep.subr.mxu0 0.0
  %85 = vmatpush1.msra.mxu0 0.0
  %86 = vmatprep.subr.mxu0 0.0
  %87 = vmatpush1.msra.mxu0 0.0
  %88 = vmatprep.subr.mxu0 0.0
  %89 = vmatpush1.msra.mxu0 0.0
  %90 = vmatprep.subr.mxu0 0.0
  %91 = vmatpush1.msra.mxu0 0.0
  %92 = vmatprep.subr.mxu0 0.0
  %93 = vmatpush1.msra.mxu0 0.0
  %94 = vmatprep.subr.mxu0 0.0
  %95 = vmatpush1.msra.mxu0 0.0
  %96 = vmatprep.subr.mxu0 0.0
  %97 = vmatpush1.msra.mxu0 0.0
  %98 = vmatprep.subr.mxu0 0.0
  %99 = vmatpush1.msra.mxu0 0.0
  %100 = vmatprep.subr.mxu0 0.0
  %101 = vmatpush1.msra.mxu0 0.0
  %102 = vmatprep.subr.mxu0 0.0
  %103 = vmatpush1.msra.mxu0 0.0
  %104 = vmatprep.subr.mxu0 0.0
  %105 = vmatpush1.msra.mxu0 0.0
  %106 = vmatprep.subr.mxu0 0.0
  %107 = vmatpush1.msra.mxu0 0.0
  %108 = vmatprep.subr.mxu0 0.0
  %109 = vmatpush1.msra.mxu0 0.0
  %110 = vmatprep.subr.mxu0 0.0
  %111 = vmatpush1.msra.mxu0 0.0
  %112 = vmatprep.subr.mxu0 0.0
  %113 = vmatpush1.msra.mxu0 0.0
  %114 = vmatprep.mubr.f32.mxu0 0.0
  %115 = vmatmul.mubr.f32.gmra.mrb[0].mxu0 %v48
  %v116 = vpop.f32.mrb[0].mxu0
  %v117 = vadd.f32 0.0, %v116
  %v118 = vpop.f32.mrb[0].mxu0
  %119 = vdwg.mxu0
  %vm120 = vcmask 916480
  %v122 = vsel %vm120, %v20, 0
  %124 = vmatprep.subr.mxu0 0.0
  %125 = vmatpush1.msra.mxu0 %v30
  %126 = vmatprep.subr.mxu0 0.0
  %127 = vmatpush1.msra.mxu0 %v31
  %128 = vmatprep.subr.mxu0 0.0
  %129 = vmatpush1.msra.mxu0 %v32
  %130 = vmatprep.subr.mxu0 0.0
  %131 = vmatpush1.msra.mxu0 %v33
  %132 = vmatprep.subr.mxu0 0.0
  %133 = vmatpush1.msra.mxu0 %v34
  %134 = vmatprep.subr.mxu0 0.0
  %135 = vmatpush1.msra.mxu0 %v35
  %136 = vmatprep.subr.mxu0 0.0
  %137 = vmatpush1.msra.mxu0 %v36
  %138 = vmatprep.subr.mxu0 0.0
  %139 = vmatpush1.msra.mxu0 %v37
  %140 = vmatprep.subr.mxu0 0.0
  %141 = vmatpush1.msra.mxu0 %v38
  %142 = vmatprep.subr.mxu0 0.0
  %143 = vmatpush1.msra.mxu0 %v39
  %144 = vmatprep.subr.mxu0 0.0
  %145 = vmatpush1.msra.mxu0 %v40
  %146 = vmatprep.subr.mxu0 0.0
  %147 = vmatpush1.msra.mxu0 %v41
  %148 = vmatprep.subr.mxu0 0.0
  %149 = vmatpush1.msra.mxu0 %v42
  %150 = vmatprep.subr.mxu0 0.0
  %151 = vmatpush1.msra.mxu0 %v43
  %152 = vmatprep.subr.mxu0 0.0
  %153 = vmatpush1.msra.mxu0 0.0
  %154 = vmatprep.subr.mxu0 0.0
  %155 = vmatpush1.msra.mxu0 0.0
  %156 = vmatprep.subr.mxu0 0.0
  %157 = vmatpush1.msra.mxu0 0.0
  %158 = vmatprep.subr.mxu0 0.0
  %159 = vmatpush1.msra.mxu0 0.0
  %160 = vmatprep.subr.mxu0 0.0
  %161 = vmatpush1.msra.mxu0 0.0
  %162 = vmatprep.subr.mxu0 0.0
  %163 = vmatpush1.msra.mxu0 0.0
  %164 = vmatprep.subr.mxu0 0.0
  %165 = vmatpush1.msra.mxu0 0.0
  %166 = vmatprep.subr.mxu0 0.0
  %167 = vmatpush1.msra.mxu0 0.0
  %168 = vmatprep.subr.mxu0 0.0
  %169 = vmatpush1.msra.mxu0 0.0
  %170 = vmatprep.subr.mxu0 0.0
  %171 = vmatpush1.msra.mxu0 0.0
  %172 = vmatprep.subr.mxu0 0.0
  %173 = vmatpush1.msra.mxu0 0.0
  %174 = vmatprep.subr.mxu0 0.0
  %175 = vmatpush1.msra.mxu0 0.0
  %176 = vmatprep.subr.mxu0 0.0
  %177 = vmatpush1.msra.mxu0 0.0
  %178 = vmatprep.subr.mxu0 0.0
  %179 = vmatpush1.msra.mxu0 0.0
  %180 = vmatprep.subr.mxu0 0.0
  %181 = vmatpush1.msra.mxu0 0.0
  %182 = vmatprep.subr.mxu0 0.0
  %183 = vmatpush1.msra.mxu0 0.0
  %184 = vmatprep.subr.mxu0 0.0
  %185 = vmatpush1.msra.mxu0 0.0
  %186 = vmatprep.subr.mxu0 0.0
  %187 = vmatpush1.msra.mxu0 0.0
  %188 = vmatprep.mubr.f32.mxu0 0.0
  %189 = vmatmul.mubr.f32.gmra.mrb[0].mxu0 %v122
  %v190 = vpop.f32.mrb[0].mxu0
  %v191 = vadd.f32 %v117, %v190
  %v192 = vpop.f32.mrb[0].mxu0
  %193 = vdwg.mxu0
  %v194 = vmax.f32 %v191, 0.0
  %v195 = vld [vmem:[%s4] sm:$0x1]
  %vm196 = vcmask 261120
  %v198 = vsel %vm196, %v195, 0
  %v201 = vsel %vm196, %v194, 0
  %203 = vmatprep.subr.mxu0 0.0
  %204 = vmatpush1.xpose.msra.mxu0 %v201
  %205 = vmatprep.subr.mxu0 0.0
  %206 = vmatpush1.xpose.msra.mxu0 0.0
  %207 = vmatprep.subr.mxu0 0.0
  %208 = vmatpush1.xpose.msra.mxu0 0.0
  %209 = vmatprep.subr.mxu0 0.0
  %210 = vmatpush1.xpose.msra.mxu0 0.0
  %211 = vmatprep.subr.mxu0 0.0
  %212 = vmatpush1.xpose.msra.mxu0 0.0
  %213 = vmatprep.subr.mxu0 0.0
  %214 = vmatpush1.xpose.msra.mxu0 0.0
  %215 = vmatprep.subr.mxu0 0.0
  %216 = vmatpush1.xpose.msra.mxu0 0.0
  %217 = vmatprep.subr.mxu0 0.0
  %218 = vmatpush1.xpose.msra.mxu0 0.0
  %219 = vmatprep.subr.mxu0 0.0
  %220 = vmatpush1.xpose.msra.mxu0 0.0
  %221 = vmatprep.subr.mxu0 0.0
  %222 = vmatpush1.xpose.msra.mxu0 0.0
  %223 = vmatprep.subr.mxu0 0.0
  %224 = vmatpush1.xpose.msra.mxu0 0.0
  %225 = vmatprep.subr.mxu0 0.0
  %226 = vmatpush1.xpose.msra.mxu0 0.0
  %227 = vmatprep.subr.mxu0 0.0
  %228 = vmatpush1.xpose.msra.mxu0 0.0
  %229 = vmatprep.subr.mxu0 0.0
  %230 = vmatpush1.xpose.msra.mxu0 0.0
  %231 = vmatprep.subr.mxu0 0.0
  %232 = vmatpush1.xpose.msra.mxu0 0.0
  %233 = vmatprep.subr.mxu0 0.0
  %234 = vmatpush1.xpose.msra.mxu0 0.0
  %235 = vmatprep.subr.mxu0 0.0
  %236 = vmatpush1.xpose.msra.mxu0 0.0
  %237 = vmatprep.subr.mxu0 0.0
  %238 = vmatpush1.xpose.msra.mxu0 0.0
  %239 = vmatprep.subr.mxu0 0.0
  %240 = vmatpush1.xpose.msra.mxu0 0.0
  %241 = vmatprep.subr.mxu0 0.0
  %242 = vmatpush1.xpose.msra.mxu0 0.0
  %243 = vmatprep.subr.mxu0 0.0
  %244 = vmatpush1.xpose.msra.mxu0 0.0
  %245 = vmatprep.subr.mxu0 0.0
  %246 = vmatpush1.xpose.msra.mxu0 0.0
  %247 = vmatprep.subr.mxu0 0.0
  %248 = vmatpush1.xpose.msra.mxu0 0.0
  %249 = vmatprep.subr.mxu0 0.0
  %250 = vmatpush1.xpose.msra.mxu0 0.0
  %251 = vmatprep.subr.mxu0 0.0
  %252 = vmatpush1.xpose.msra.mxu0 0.0
  %253 = vmatprep.subr.mxu0 0.0
  %254 = vmatpush1.xpose.msra.mxu0 0.0
  %255 = vmatprep.subr.mxu0 0.0
  %256 = vmatpush1.xpose.msra.mxu0 0.0
  %257 = vmatprep.subr.mxu0 0.0
  %258 = vmatpush1.xpose.msra.mxu0 0.0
  %259 = vmatprep.subr.mxu0 0.0
  %260 = vmatpush1.xpose.msra.mxu0 0.0
  %261 = vmatprep.subr.mxu0 0.0
  %262 = vmatpush1.xpose.msra.mxu0 0.0
  %263 = vmatprep.subr.mxu0 0.0
  %264 = vmatpush1.xpose.msra.mxu0 0.0
  %265 = vmatprep.subr.mxu0 0.0
  %266 = vmatpush1.xpose.msra.mxu0 0.0
  %267 = vmatprep.mubr.f32.mxu0 0.0
  %268 = vmatmul.mubr.f32.gmra.mrb[0].mxu0 %v198
  %v269 = vpop.f32.mrb[0].mxu0
  %v270 = vadd.f32 0.0, %v269
  %v271 = vpop.f32.mrb[0].mxu0
  %272 = vdwg.mxu0
  %vm273 = vcmask 57344
  %274 = vst.msk [vmem:[%s5] sm:$0x1] %vm273, %v270
  // Predicated region
  $region22: #{scoring_module_forward.1} parent=0 // pred_check
    _
  $region23: #{scoring_module_forward.1} parent=0 // pred_check_branch
    %276 = sbr.rel (0) target = $region25
  $region24: #{scoring_module_forward.1} parent=0 // pred_region
    _
  $region25: #{scoring_module_forward.1} parent=0 // pred_fallthru
    _
  // Predicated region
  $region26: #{scoring_module_forward.1} parent=0 // pred_check
    _
  $region27: #{scoring_module_forward.1} parent=0 // pred_check_branch
    %278 = sbr.rel (0) target = $region29
  $region28: #{scoring_module_forward.1} parent=0 // pred_region
    _
  $region29: #{scoring_module_forward.1} parent=0 // pred_fallthru
    _

</llo_original>
